<compile_context>
chip_gen: v7x
topology: tpu7x:2x2x1
jax: 0.10.0
libtpu: 0.0.40
codegen_flags: <defaults>
</compile_context>

<pallas_src>
import functools

import jax
import jax.numpy as jnp
from jax import lax
from jax.experimental import pallas as pl
from jax.experimental.pallas import tpu as pltpu


def _attentive_pool_kernel(x_ref, w1_ref, b1_ref, w2_ref, out_ref,
                           s_sc, m_sc, l_sc, acc_sc, *, use_bf16_matmul=False):
    # Grid: (batch tiles ["parallel"], T tiles ["arbitrary", last]).
    # x_ref  : (TB, C, TT)   native (batch, channel, time) block, time on lanes
    # w1_ref : (H, C)        first Linear weight, used as stored: (H,C) @ (C,TT)
    # b1_ref : (H, 1)        first Linear bias (column)
    # w2_ref : (H, 1)        second Linear weight (column; VPU path)
    # out_ref: (TB, C, 1)    pooled output block, revisited across the T axis
    # s_sc   : (TB, 1, TT)   scores of the current T tile
    # m_sc   : (TB, 1, 1)    running max          (online softmax)
    # l_sc   : (TB, 1, 1)    running denominator
    # acc_sc : (TB, C, 1)    running exp-weighted sum of x (f32)
    t = pl.program_id(1)

    @pl.when(t == 0)
    def _init():
        m_sc[...] = jnp.full(m_sc.shape, -jnp.inf, m_sc.dtype)
        l_sc[...] = jnp.zeros(l_sc.shape, l_sc.dtype)
        acc_sc[...] = jnp.zeros(acc_sc.shape, acc_sc.dtype)

    tb, _, tt = x_ref.shape
    h_dim = w1_ref.shape[0]

    w1 = w1_ref[...]
    if use_bf16_matmul:
        w1 = w1.astype(jnp.bfloat16)
    # Hoist the b1 / w2 broadcasts out of the batch loop (JAX does not CSE
    # broadcast_in_dim; leaving them inside would materialize TB copies).
    b1_full = jnp.broadcast_to(b1_ref[...], (h_dim, tt))
    w2_full = jnp.broadcast_to(w2_ref[...], (h_dim, tt))

    def score_row(b, carry):
        xb = x_ref[b]                                              # (C, TT)
        rhs = xb.astype(jnp.bfloat16) if use_bf16_matmul else xb
        # Linear(C -> H) on the MXU: (H, C) @ (C, TT) -> (H, TT).  The T tile is
        # sized >= 128 whenever T allows, so each push has a wide N dimension.
        h = jnp.dot(w1, rhs, preferred_element_type=jnp.float32)
        h = jnp.maximum(h + b1_full, 0.0)
        # Linear(H -> 1) as a VPU multiply + sublane reduce (no N=1 MXU pass);
        # its bias b2 is dropped: softmax is shift-invariant.
        s_sc[b] = jnp.sum(h * w2_full, axis=0, keepdims=True)      # (1, TT)
        return carry

    # fori_loop (not a Python for): keeps vreg live ranges bounded as TB grows.
    lax.fori_loop(0, tb, score_row, 0, unroll=True)

    x = x_ref[...].astype(jnp.float32)                             # (TB, C, TT)
    s = s_sc[...]                                                  # (TB, 1, TT)

    # Online (flash-style) softmax-weighted pooling across T tiles.
    m_prev = m_sc[...]                                             # (TB, 1, 1)
    m_new = jnp.maximum(m_prev, jnp.max(s, axis=-1, keepdims=True))
    alpha = jnp.exp(m_prev - m_new)                                # (TB, 1, 1)
    e = jnp.exp(s - m_new)                                         # (TB, 1, TT)
    l_sc[...] = alpha * l_sc[...] + jnp.sum(e, axis=-1, keepdims=True)
    acc_sc[...] = alpha * acc_sc[...] + jnp.sum(x * e, axis=-1, keepdims=True)
    m_sc[...] = m_new

    @pl.when(t == pl.num_programs(1) - 1)
    def _finalize():
        den = l_sc[...]                                            # (TB, 1, 1)
        # EUP reciprocal + two Newton steps: full f32 accuracy, frees the VPU.
        inv = pl.reciprocal(den, approx=True)
        inv = inv * (2.0 - den * inv)
        inv = inv * (2.0 - den * inv)
        out_ref[...] = (acc_sc[...] * inv).astype(out_ref.dtype)


def _pad(n, m):
    return -(-n // m) * m


def _tpu_vmem_and_cores():
    """(per-core VMEM bytes, TensorCores per chip), with conservative fallbacks."""
    cap = 64 << 20                      # assume v7x (smallest VMEM) if query fails
    cores = None
    try:
        info = pltpu.get_tpu_info()
        cap = int(getattr(info, "vmem_capacity_bytes", cap)) or cap
        for name in ("num_cores", "core_count", "tensorcores_per_chip",
                     "num_tensorcores"):
            val = getattr(info, name, None)
            if isinstance(val, int) and val > 0:
                cores = val
                break
    except Exception:
        pass
    if cores is None:
        # Heuristic: 64 MiB/TC chips (v7x) have 2 TCs; 128 MiB chips (v5e/v6e) have 1.
        cores = 2 if cap < (100 << 20) else 1
    return cap, cores


def _choose_tiles(batch, channels, seq, hidden, itemsize, vmem_cap, num_cores,
                  max_unroll=16):
    """Padding-aware, generation-aware tile selection.

    Returns (TB, TT, resident_vmem_estimate_bytes)."""
    lane, sub = 128, 8
    c_pad = _pad(channels, sub)

    # Total-resident budget: ~70% of this generation's VMEM (v7x: ~45 MiB of 64;
    # v5e/v6e: ~90 MiB of 128), capped at 96 MiB.
    total_budget = max(24 << 20, min(int(vmem_cap * 0.70), 96 << 20))
    # Per x-block target (it is double-buffered): multi-MiB blocks amortize the
    # ~0.35 us per-grid-step overhead (>=85% of HBM roofline per tile sweeps).
    x_blk_target = max(1 << 20, min(8 << 20, total_budget // 6))

    # --- T tile: full T if it fits; otherwise the largest multiple-of-128
    # divisor of T under the per-block target (the flash-style accumulators
    # combine tiles exactly). ---
    if seq % lane == 0 and c_pad * _pad(seq, lane) * itemsize > x_blk_target:
        divs = [d for d in range(lane, seq + 1, lane) if seq % d == 0]
        fits = [d for d in divs if c_pad * d * itemsize <= x_blk_target]
        tt = max(fits) if fits else min(divs)
    else:
        # TODO(synk): masked edge T-tiles for huge T that is not a multiple of 128.
        tt = seq
    tt_bytes = c_pad * _pad(tt, lane) * itemsize

    h_pad = _pad(hidden, sub)
    w1_bytes = h_pad * _pad(channels, lane) * itemsize
    vec_bytes = h_pad * lane * itemsize

    def resident(tb):
        x_blk = tb * tt_bytes
        out_blk = tb * c_pad * lane * itemsize
        scratch = (tb * sub * _pad(tt, lane)        # s_sc
                   + 2 * tb * sub * lane            # m_sc, l_sc
                   + tb * c_pad * lane) * 4         # acc_sc (f32)
        return 2 * (x_blk + w1_bytes + 2 * vec_bytes + out_blk) + scratch

    tb = 1
    for cand in range(1, batch + 1):
        if batch % cand or cand > max_unroll:
            continue
        if cand * tt_bytes > (16 << 20) or resident(cand) > total_budget:
            continue
        # Keep >= 2 batch-grid steps only on multi-TensorCore chips (v7x) so
        # both cores get work; on 1-TC chips one big step is strictly better.
        if num_cores > 1 and batch >= 2 and batch // cand < 2:
            continue
        tb = cand
    return tb, tt, resident(tb)


def attentive_pooling(x_bct, w1, b1, w2, b2=None, *, use_bf16_matmul=False):
    """AttentivePooling forward.

    x_bct: (B, C, T) in PyTorch's native layout (no transpose / relayout of x).
    w1: (H, C), b1: (H,), w2: (1, H) or (H,).  b2 is accepted for API parity but
    unused (a scalar bias before a softmax is a no-op).  Returns (B, C)."""
    del b2                              # softmax is shift-invariant
    B, C, T = x_bct.shape
    H = w1.shape[0]
    itemsize = jnp.dtype(x_bct.dtype).itemsize

    vmem_cap, num_cores = _tpu_vmem_and_cores()
    TB, TT, resident = _choose_tiles(B, C, T, H, itemsize, vmem_cap, num_cores)
    grid = (B // TB, T // TT)

    flops = 2 * B * T * C * H + 2 * B * T * H + 2 * B * T * C
    bytes_accessed = (x_bct.size + w1.size + b1.size + w2.size + B * C) * itemsize
    vmem_limit = int(min(vmem_cap, max(resident + (4 << 20), 16 << 20)))

    kernel = functools.partial(_attentive_pool_kernel,
                               use_bf16_matmul=use_bf16_matmul)

    out = pl.pallas_call(
        kernel,
        out_shape=jax.ShapeDtypeStruct((B, C, 1), x_bct.dtype),
        grid_spec=pltpu.PrefetchScalarGridSpec(
            num_scalar_prefetch=0,
            grid=grid,
            in_specs=[
                pl.BlockSpec((TB, C, TT), lambda i, t: (i, 0, t)),  # x, native layout
                pl.BlockSpec((H, C), lambda i, t: (0, 0)),          # W1 (no transpose)
                pl.BlockSpec((H, 1), lambda i, t: (0, 0)),          # b1 column
                pl.BlockSpec((H, 1), lambda i, t: (0, 0)),          # w2 column
            ],
            out_specs=pl.BlockSpec((TB, C, 1), lambda i, t: (i, 0, 0)),
            scratch_shapes=[
                pltpu.VMEM((TB, 1, TT), jnp.float32),   # current-tile scores
                pltpu.VMEM((TB, 1, 1), jnp.float32),    # running max
                pltpu.VMEM((TB, 1, 1), jnp.float32),    # running denominator
                pltpu.VMEM((TB, C, 1), jnp.float32),    # running weighted sum
            ],
        ),
        compiler_params=pltpu.CompilerParams(
            dimension_semantics=("parallel", "arbitrary"),
            vmem_limit_bytes=vmem_limit,
        ),
        cost_estimate=pl.CostEstimate(
            flops=flops, transcendentals=2 * B * T, bytes_accessed=bytes_accessed),
    )(x_bct, w1, b1.reshape(H, 1), jnp.reshape(w2, (H, 1)))

    return out[..., 0]          # drop trailing size-1 dim (free)


def _reference(x, w1, b1, w2, b2):
    # Pure-JAX mirror of the PyTorch forward (including the redundant b2).
    xt = jnp.transpose(x, (0, 2, 1))                        # (B, T, C)
    h = jnp.maximum(xt @ w1.T + b1, 0.0)                    # (B, T, H)
    s = h @ w2.T + b2                                       # (B, T, 1)
    s = jnp.transpose(s, (0, 2, 1))                         # (B, 1, T)
    p = jax.nn.softmax(s, axis=-1)                          # (B, 1, T)
    return jnp.sum(x * p, axis=-1)                          # (B, C)


if __name__ == "__main__":
    # Module hyper-params (defaults from the PyTorch module).
    input_size = 64    # C
    hidden_size = 128  # H
    B, T = 2, 16

    key = jax.random.PRNGKey(0)
    kx, k1, k2, k3, k4 = jax.random.split(key, 5)

    bound1 = 1.0 / (input_size ** 0.5)
    bound2 = 1.0 / (hidden_size ** 0.5)
    w1 = jax.random.uniform(k1, (hidden_size, input_size), jnp.float32, -bound1, bound1)
    b1 = jax.random.uniform(k2, (hidden_size,), jnp.float32, -bound1, bound1)
    w2 = jax.random.uniform(k3, (1, hidden_size), jnp.float32, -bound2, bound2)
    b2 = jax.random.uniform(k4, (1,), jnp.float32, -bound2, bound2)

    x = jax.random.normal(kx, (B, input_size, T), jnp.float32)  # (B, C, T), PyTorch layout

    out = attentive_pooling(x, w1, b1, w2, b2)
    out = jax.block_until_ready(out)

    ref = _reference(x, w1, b1, w2, b2)
    assert out.shape == (B, input_size)
    assert jnp.allclose(out, ref, atol=1e-5, rtol=1e-5), "mismatch vs reference"
    print("KERNEL_OK")
</pallas_src>

<mosaic_0001>
module attributes {stable_mosaic.version = 11 : i64} {
  func.func @_attentive_pool_kernel(%arg0: i32, %arg1: i32, %arg2: memref<1x64x16xf32, #tpu.memory_space<vmem>>, %arg3: memref<128x64xf32, #tpu.memory_space<vmem>>, %arg4: memref<128x1xf32, #tpu.memory_space<vmem>>, %arg5: memref<128x1xf32, #tpu.memory_space<vmem>>, %arg6: memref<1x64x1xf32, #tpu.memory_space<vmem>>, %arg7: memref<1x1x16xf32, #tpu.memory_space<vmem>>, %arg8: memref<1x1x1xf32, #tpu.memory_space<vmem>>, %arg9: memref<1x1x1xf32, #tpu.memory_space<vmem>>, %arg10: memref<1x64x1xf32, #tpu.memory_space<vmem>>) attributes {dimension_semantics = [#tpu.dimension_semantics<parallel>, #tpu.dimension_semantics<arbitrary>], iteration_bounds = array<i64: 2, 1>, scalar_prefetch = 0 : i64, scratch_operands = 4 : i64, tpu.core_type = #tpu.core_type<tc>, window_params = [{transform_indices = @transform_0, window_bounds = array<i64: 1, 64, 16>}, {pipeline_mode = #tpu.pipeline_mode<synchronous>, transform_indices = @transform_1, window_bounds = array<i64: 128, 64>}, {pipeline_mode = #tpu.pipeline_mode<synchronous>, transform_indices = @transform_2, window_bounds = array<i64: 128, 1>}, {pipeline_mode = #tpu.pipeline_mode<synchronous>, transform_indices = @transform_3, window_bounds = array<i64: 128, 1>}, {transform_indices = @transform_4, window_bounds = array<i64: 1, 64, 1>}]} {
    %c0_i32 = arith.constant 0 : i32
    %0 = arith.cmpi eq, %arg1, %c0_i32 : i32
    %1 = arith.extui %0 : i1 to i32
    %c0_i32_0 = arith.constant 0 : i32
    %2 = arith.cmpi ne, %1, %c0_i32_0 : i32
    scf.if %2 {
      %cst_42 = arith.constant 0xFF800000 : f32
      %54 = vector.broadcast %cst_42 : f32 to vector<1x1x1xf32>
      %c0_43 = arith.constant 0 : index
      %c0_44 = arith.constant 0 : index
      %c0_45 = arith.constant 0 : index
      %55 = vector.load %arg8[%c0_43, %c0_44, %c0_45] : memref<1x1x1xf32, #tpu.memory_space<vmem>>, vector<1x1x1xf32>
      tpu.vector_store %arg8[%c0_43, %c0_44, %c0_45], %54 {strides = array<i32>} : memref<1x1x1xf32, #tpu.memory_space<vmem>>, vector<1x1x1xf32>,
      %cst_46 = arith.constant 0.000000e+00 : f32
      %56 = vector.broadcast %cst_46 : f32 to vector<1x1x1xf32>
      %c0_47 = arith.constant 0 : index
      %c0_48 = arith.constant 0 : index
      %c0_49 = arith.constant 0 : index
      %57 = vector.load %arg9[%c0_47, %c0_48, %c0_49] : memref<1x1x1xf32, #tpu.memory_space<vmem>>, vector<1x1x1xf32>
      tpu.vector_store %arg9[%c0_47, %c0_48, %c0_49], %56 {strides = array<i32>} : memref<1x1x1xf32, #tpu.memory_space<vmem>>, vector<1x1x1xf32>,
      %cst_50 = arith.constant 0.000000e+00 : f32
      %58 = vector.broadcast %cst_50 : f32 to vector<1x64x1xf32>
      %c0_51 = arith.constant 0 : index
      %c0_52 = arith.constant 0 : index
      %c0_53 = arith.constant 0 : index
      %59 = vector.load %arg10[%c0_51, %c0_52, %c0_53] : memref<1x64x1xf32, #tpu.memory_space<vmem>>, vector<1x64x1xf32>
      tpu.vector_store %arg10[%c0_51, %c0_52, %c0_53], %58 {strides = array<i32>} : memref<1x64x1xf32, #tpu.memory_space<vmem>>, vector<1x64x1xf32>,
    } else {
    }
    %c0 = arith.constant 0 : index
    %c0_1 = arith.constant 0 : index
    %3 = vector.load %arg3[%c0, %c0_1] : memref<128x64xf32, #tpu.memory_space<vmem>>, vector<128x64xf32>
    %c0_2 = arith.constant 0 : index
    %c0_3 = arith.constant 0 : index
    %4 = vector.load %arg4[%c0_2, %c0_3] : memref<128x1xf32, #tpu.memory_space<vmem>>, vector<128x1xf32>
    %5 = vector.shape_cast %4 : vector<128x1xf32> to vector<128x1xf32>
    %6 = vector.broadcast %5 : vector<128x1xf32> to vector<128x16xf32>
    %c0_4 = arith.constant 0 : index
    %c0_5 = arith.constant 0 : index
    %7 = vector.load %arg5[%c0_4, %c0_5] : memref<128x1xf32, #tpu.memory_space<vmem>>, vector<128x1xf32>
    %8 = vector.shape_cast %7 : vector<128x1xf32> to vector<128x1xf32>
    %9 = vector.broadcast %8 : vector<128x1xf32> to vector<128x16xf32>
    %c0_i32_6 = arith.constant 0 : i32
    %10 = arith.index_cast %c0_i32_6 : i32 to index
    %c0_7 = arith.constant 0 : index
    %c0_8 = arith.constant 0 : index
    %11 = vector.load %arg2[%10, %c0_7, %c0_8] : memref<1x64x16xf32, #tpu.memory_space<vmem>>, vector<1x64x16xf32>
    %12 = vector.shape_cast %11 : vector<1x64x16xf32> to vector<64x16xf32>
    %cst = arith.constant dense<0.000000e+00> : vector<128x16xf32>
    %13 = tpu.matmul %3, %12, %cst {dimension_numbers = #tpu.dot_dimension_numbers<[1], [0], [0], [1], [0, 0, 1, 1], [], []>} : vector<128x64xf32>, vector<64x16xf32>, vector<128x16xf32> -> vector<128x16xf32>
    %14 = arith.addf %13, %6 : vector<128x16xf32>
    %cst_9 = arith.constant 0.000000e+00 : f32
    %15 = vector.broadcast %cst_9 : f32 to vector<128x16xf32>
    %16 = arith.maximumf %14, %15 : vector<128x16xf32>
    %17 = arith.mulf %16, %9 : vector<128x16xf32>
    %cst_10 = arith.constant dense<0.000000e+00> : vector<16xf32>
    %18 = vector.multi_reduction <add>, %17, %cst_10 [0] : vector<128x16xf32> to vector<16xf32>
    %19 = vector.shape_cast %18 : vector<16xf32> to vector<1x16xf32>
    %20 = arith.index_cast %c0_i32_6 : i32 to index
    %c0_11 = arith.constant 0 : index
    %c0_12 = arith.constant 0 : index
    %21 = vector.load %arg7[%20, %c0_11, %c0_12] : memref<1x1x16xf32, #tpu.memory_space<vmem>>, vector<1x1x16xf32>
    %22 = vector.shape_cast %21 : vector<1x1x16xf32> to vector<1x16xf32>
    %23 = vector.shape_cast %19 : vector<1x16xf32> to vector<1x1x16xf32>
    tpu.vector_store %arg7[%20, %c0_11, %c0_12], %23 {strides = array<i32>} : memref<1x1x16xf32, #tpu.memory_space<vmem>>, vector<1x1x16xf32>,
    %c1_i32 = arith.constant 1 : i32
    %c0_13 = arith.constant 0 : index
    %c0_14 = arith.constant 0 : index
    %c0_15 = arith.constant 0 : index
    %24 = vector.load %arg2[%c0_13, %c0_14, %c0_15] : memref<1x64x16xf32, #tpu.memory_space<vmem>>, vector<1x64x16xf32>
    %c0_16 = arith.constant 0 : index
    %c0_17 = arith.constant 0 : index
    %c0_18 = arith.constant 0 : index
    %25 = vector.load %arg7[%c0_16, %c0_17, %c0_18] : memref<1x1x16xf32, #tpu.memory_space<vmem>>, vector<1x1x16xf32>
    %c0_19 = arith.constant 0 : index
    %c0_20 = arith.constant 0 : index
    %c0_21 = arith.constant 0 : index
    %26 = vector.load %arg8[%c0_19, %c0_20, %c0_21] : memref<1x1x1xf32, #tpu.memory_space<vmem>>, vector<1x1x1xf32>
    %cst_22 = arith.constant dense<0xFF800000> : vector<1x1xf32>
    %27 = vector.multi_reduction <maximumf>, %25, %cst_22 [2] : vector<1x1x16xf32> to vector<1x1xf32>
    %28 = vector.shape_cast %27 : vector<1x1xf32> to vector<1x1x1xf32>
    %29 = arith.maximumf %26, %28 : vector<1x1x1xf32>
    %30 = arith.subf %26, %29 : vector<1x1x1xf32>
    %31 = math.exp %30 : vector<1x1x1xf32>
    %32 = vector.broadcast %29 : vector<1x1x1xf32> to vector<1x1x16xf32>
    %33 = arith.subf %25, %32 : vector<1x1x16xf32>
    %34 = math.exp %33 : vector<1x1x16xf32>
    %c0_23 = arith.constant 0 : index
    %c0_24 = arith.constant 0 : index
    %c0_25 = arith.constant 0 : index
    %35 = vector.load %arg9[%c0_23, %c0_24, %c0_25] : memref<1x1x1xf32, #tpu.memory_space<vmem>>, vector<1x1x1xf32>
    %36 = arith.mulf %31, %35 : vector<1x1x1xf32>
    %cst_26 = arith.constant dense<0.000000e+00> : vector<1x1xf32>
    %37 = vector.multi_reduction <add>, %34, %cst_26 [2] : vector<1x1x16xf32> to vector<1x1xf32>
    %38 = vector.shape_cast %37 : vector<1x1xf32> to vector<1x1x1xf32>
    %39 = arith.addf %36, %38 : vector<1x1x1xf32>
    %c0_27 = arith.constant 0 : index
    %c0_28 = arith.constant 0 : index
    %c0_29 = arith.constant 0 : index
    %40 = vector.load %arg9[%c0_27, %c0_28, %c0_29] : memref<1x1x1xf32, #tpu.memory_space<vmem>>, vector<1x1x1xf32>
    tpu.vector_store %arg9[%c0_27, %c0_28, %c0_29], %39 {strides = array<i32>} : memref<1x1x1xf32, #tpu.memory_space<vmem>>, vector<1x1x1xf32>,
    %c0_30 = arith.constant 0 : index
    %c0_31 = arith.constant 0 : index
    %c0_32 = arith.constant 0 : index
    %41 = vector.load %arg10[%c0_30, %c0_31, %c0_32] : memref<1x64x1xf32, #tpu.memory_space<vmem>>, vector<1x64x1xf32>
    %42 = vector.broadcast %31 : vector<1x1x1xf32> to vector<1x64x1xf32>
    %43 = arith.mulf %42, %41 : vector<1x64x1xf32>
    %44 = vector.broadcast %34 : vector<1x1x16xf32> to vector<1x64x16xf32>
    %45 = arith.mulf %24, %44 : vector<1x64x16xf32>
    %cst_33 = arith.constant dense<0.000000e+00> : vector<1x64xf32>
    %46 = vector.multi_reduction <add>, %45, %cst_33 [2] : vector<1x64x16xf32> to vector<1x64xf32>
    %47 = vector.shape_cast %46 : vector<1x64xf32> to vector<1x64x1xf32>
    %48 = arith.addf %43, %47 : vector<1x64x1xf32>
    %c0_34 = arith.constant 0 : index
    %c0_35 = arith.constant 0 : index
    %c0_36 = arith.constant 0 : index
    %49 = vector.load %arg10[%c0_34, %c0_35, %c0_36] : memref<1x64x1xf32, #tpu.memory_space<vmem>>, vector<1x64x1xf32>
    tpu.vector_store %arg10[%c0_34, %c0_35, %c0_36], %48 {strides = array<i32>} : memref<1x64x1xf32, #tpu.memory_space<vmem>>, vector<1x64x1xf32>,
    %c0_37 = arith.constant 0 : index
    %c0_38 = arith.constant 0 : index
    %c0_39 = arith.constant 0 : index
    %50 = vector.load %arg8[%c0_37, %c0_38, %c0_39] : memref<1x1x1xf32, #tpu.memory_space<vmem>>, vector<1x1x1xf32>
    tpu.vector_store %arg8[%c0_37, %c0_38, %c0_39], %29 {strides = array<i32>} : memref<1x1x1xf32, #tpu.memory_space<vmem>>, vector<1x1x1xf32>,
    %c0_i32_40 = arith.constant 0 : i32
    %51 = arith.cmpi eq, %arg1, %c0_i32_40 : i32
    %52 = arith.extui %51 : i1 to i32
    %c0_i32_41 = arith.constant 0 : i32
    %53 = arith.cmpi ne, %52, %c0_i32_41 : i32
    scf.if %53 {
      %c0_42 = arith.constant 0 : index
      %c0_43 = arith.constant 0 : index
      %c0_44 = arith.constant 0 : index
      %54 = vector.load %arg9[%c0_42, %c0_43, %c0_44] : memref<1x1x1xf32, #tpu.memory_space<vmem>>, vector<1x1x1xf32>
      %55 = tpu.reciprocal %54 {approx = true} : vector<1x1x1xf32> -> vector<1x1x1xf32>
      %56 = arith.mulf %54, %55 : vector<1x1x1xf32>
      %cst_45 = arith.constant 2.000000e+00 : f32
      %57 = vector.broadcast %cst_45 : f32 to vector<1x1x1xf32>
      %58 = arith.subf %57, %56 : vector<1x1x1xf32>
      %59 = arith.mulf %55, %58 : vector<1x1x1xf32>
      %60 = arith.mulf %54, %59 : vector<1x1x1xf32>
      %cst_46 = arith.constant 2.000000e+00 : f32
      %61 = vector.broadcast %cst_46 : f32 to vector<1x1x1xf32>
      %62 = arith.subf %61, %60 : vector<1x1x1xf32>
      %63 = arith.mulf %59, %62 : vector<1x1x1xf32>
      %c0_47 = arith.constant 0 : index
      %c0_48 = arith.constant 0 : index
      %c0_49 = arith.constant 0 : index
      %64 = vector.load %arg10[%c0_47, %c0_48, %c0_49] : memref<1x64x1xf32, #tpu.memory_space<vmem>>, vector<1x64x1xf32>
      %65 = vector.broadcast %63 : vector<1x1x1xf32> to vector<1x64x1xf32>
      %66 = arith.mulf %64, %65 : vector<1x64x1xf32>
      %c0_50 = arith.constant 0 : index
      %c0_51 = arith.constant 0 : index
      %c0_52 = arith.constant 0 : index
      %67 = vector.load %arg6[%c0_50, %c0_51, %c0_52] : memref<1x64x1xf32, #tpu.memory_space<vmem>>, vector<1x64x1xf32>
      tpu.vector_store %arg6[%c0_50, %c0_51, %c0_52], %66 {strides = array<i32>} : memref<1x64x1xf32, #tpu.memory_space<vmem>>, vector<1x64x1xf32>,
    } else {
    }
    return
  }
  func.func @transform_0(%arg0: i32, %arg1: i32) -> (i32, i32, i32) {
    %c0_i32 = arith.constant 0 : i32
    %c0_i32_0 = arith.constant 0 : i32
    return %arg0, %c0_i32, %arg1 : i32, i32, i32
  }
  func.func @transform_1(%arg0: i32, %arg1: i32) -> (i32, i32) {
    %c0_i32 = arith.constant 0 : i32
    %c0_i32_0 = arith.constant 0 : i32
    %c0_i32_1 = arith.constant 0 : i32
    return %c0_i32, %c0_i32_0 : i32, i32
  }
  func.func @transform_2(%arg0: i32, %arg1: i32) -> (i32, i32) {
    %c0_i32 = arith.constant 0 : i32
    %c0_i32_0 = arith.constant 0 : i32
    %c0_i32_1 = arith.constant 0 : i32
    return %c0_i32, %c0_i32_0 : i32, i32
  }
  func.func @transform_3(%arg0: i32, %arg1: i32) -> (i32, i32) {
    %c0_i32 = arith.constant 0 : i32
    %c0_i32_0 = arith.constant 0 : i32
    %c0_i32_1 = arith.constant 0 : i32
    return %c0_i32, %c0_i32_0 : i32, i32
  }
  func.func @transform_4(%arg0: i32, %arg1: i32) -> (i32, i32, i32) {
    %c0_i32 = arith.constant 0 : i32
    %c0_i32_0 = arith.constant 0 : i32
    %c0_i32_1 = arith.constant 0 : i32
    return %arg0, %c0_i32, %c0_i32_0 : i32, i32, i32
  }
}

</mosaic_0001>

<llo_original>
// kernel: tpu_custom_call.1
$region0: #{tpu_custom_call.1}
  #allocation0 [shape = 'u32[]', space=smem, size = 0x4, offset = 0x4, fixed_abs, tag = 'smem constant byte address 0x4 - core index']
  #allocation1 [shape = 'u32[144,128]{1,0:T(1,128)}', space=vmem, size = 0x12000, scoped, tag = 'internal scratch']
  #allocation2 [shape = 'f32[1,1,16]{2,1,0:T(1,128)}', space=vmem, size = 0x200, scoped, tag = 'scratch operand']
  #allocation3 [shape = 'f32[1,1,1]{2,1,0:T(1,128)}', space=vmem, size = 0x200, scoped, tag = 'scratch operand']
  #allocation4 [shape = 'f32[1,1,1]{2,1,0:T(1,128)}', space=vmem, size = 0x200, scoped, tag = 'scratch operand']
  #allocation5 [shape = 'f32[1,64,1]{2,1,0:T(8,128)}', space=vmem, size = 0x8000, scoped, tag = 'scratch operand']
  %s0 = inlined_call_operand.vmem [shape: f32[2,64,16], index: 0, kind: input, shape index: {}]
  %s1 = inlined_call_operand.vmem [shape: f32[128,64], index: 1, kind: input, shape index: {}]
  %s2 = inlined_call_operand.vmem [shape: f32[128,1], index: 2, kind: input, shape index: {}]
  %s3 = inlined_call_operand.vmem [shape: f32[128,1], index: 3, kind: input, shape index: {}]
  %s4 = inlined_call_operand.vmem [shape: f32[2,64,1], index: 4, kind: output, shape index: {}]
  %s5 = sld [smem:[#allocation0]]
  $region57: #{tpu_custom_call.1} parent=0
    _
  %s7 = ssub.s32 1, %s5
  %s8 = scalar_select 0, %s7, %s5
  loop: start=0, step=1, limit=4
  $region2: #{tpu_custom_call.1} parent=0 // loop_pre_header
    _
  $region3: #{tpu_custom_call.1} parent=0 // loop_header
    %s10 = sphi 0, %s14
    %p11 = scmp.ge.s32.totalorder %s10, 4
    %s17 = sphi 0, %s29
    %s18 = sphi 0, %s25
    %s19 = sphi 0, %s17
    %s20 = sphi 0, %s18
    %s21 = sphi 0, %s19
    %s22 = sphi 0, %s20
    %s34 = sphi 0, %s36
    %s37 = sphi 0, %s34
    %s38 = sphi 0, %s37
    %s54 = sphi 0, %s38
    %s58 = sphi 0, %s58
    %s60 = sphi 0, %s58
    %s61 = sphi 0, %s60
    %s75 = sphi 0, %s61
    %s79 = sphi 0, %s79
    %s81 = sphi 0, %s79
    %s82 = sphi 0, %s81
    %s96 = sphi 0, %s82
    %s100 = sphi 0, %s100
    %s102 = sphi 0, %s100
    %s103 = sphi 0, %s102
    %s117 = sphi 0, %s103
    %s123 = sphi 0, %s125
    %s126 = sphi 0, %s123
    %s127 = sphi 0, %s126
    %s143 = sphi 0, %s127
  $region4: #{tpu_custom_call.1} parent=0 // loop_header_branch
    %13 = sbr.rel (%p11) target = $region8
  $region5: #{tpu_custom_call.1} parent=0 // loop_body
    %s15 = ssub.s32 %s10, 1
    %s16 = ssub.s32 %s10, 2
    %s23 = sadd.s32 1, %s18
    %p24 = scmp.ge.s32.totalorder %s23, 1
    %s25 = scalar_select %p24, 0, %s23
    %s26 = sadd.s32 1, %s17
    %s27 = scalar_select %p24, %s26, %s17
    %p28 = scmp.ge.s32.totalorder %s27, 2
    %s29 = scalar_select %p28, 0, %s27
    %s30 = ssub.s32 %s17, %s29
    %s31 = ssub.s32 %s18, %s25
    %s32 = sor.u32 %s30, %s31
    %p33 = scmp.eq.s32.totalorder %s32, 0
    %s35 = sadd.s32 %s34, 1
    %s36 = scalar_select %p33, %s34, %s35
    %p39 = pneg %p33
    %p40 = scmp.eq.s32.totalorder %s10, 1
    %p41 = por %p39, %p40
    %p42 = scmp.ne.s32.totalorder %s34, %s37
    %p43 = scmp.eq.s32.totalorder %s10, 0
    %p44 = por %p42, %p43
    %p45 = scmp.ne.s32.totalorder %s34, %s37
    %p46 = scmp.eq.s32.totalorder %s15, 1
    %p47 = por %p45, %p46
    %p48 = scmp.ne.s32.totalorder %s37, %s38
    %p49 = scmp.eq.s32.totalorder %s15, 0
    %p50 = por %p48, %p49
    %p51 = scmp.ne.s32.totalorder %s37, %s38
    %p52 = scmp.eq.s32.totalorder %s16, 1
    %p53 = por %p51, %p52
    %p55 = scmp.ne.s32.totalorder %s38, %s54
    %p56 = scmp.eq.s32.totalorder %s16, 0
    %p57 = por %p55, %p56
    %s59 = sadd.s32 %s58, 1
    %p62 = scmp.eq.s32.totalorder %s10, 1
    %p63 = scmp.ne.s32.totalorder %s58, %s60
    %p64 = scmp.eq.s32.totalorder %s10, 0
    %p65 = por %p63, %p64
    %p66 = scmp.ne.s32.totalorder %s58, %s60
    %p67 = scmp.eq.s32.totalorder %s15, 1
    %p68 = por %p66, %p67
    %p69 = scmp.ne.s32.totalorder %s60, %s61
    %p70 = scmp.eq.s32.totalorder %s15, 0
    %p71 = por %p69, %p70
    %p72 = scmp.ne.s32.totalorder %s60, %s61
    %p73 = scmp.eq.s32.totalorder %s16, 1
    %p74 = por %p72, %p73
    %p76 = scmp.ne.s32.totalorder %s61, %s75
    %p77 = scmp.eq.s32.totalorder %s16, 0
    %p78 = por %p76, %p77
    %s80 = sadd.s32 %s79, 1
    %p83 = scmp.eq.s32.totalorder %s10, 1
    %p84 = scmp.ne.s32.totalorder %s79, %s81
    %p85 = scmp.eq.s32.totalorder %s10, 0
    %p86 = por %p84, %p85
    %p87 = scmp.ne.s32.totalorder %s79, %s81
    %p88 = scmp.eq.s32.totalorder %s15, 1
    %p89 = por %p87, %p88
    %p90 = scmp.ne.s32.totalorder %s81, %s82
    %p91 = scmp.eq.s32.totalorder %s15, 0
    %p92 = por %p90, %p91
    %p93 = scmp.ne.s32.totalorder %s81, %s82
    %p94 = scmp.eq.s32.totalorder %s16, 1
    %p95 = por %p93, %p94
    %p97 = scmp.ne.s32.totalorder %s82, %s96
    %p98 = scmp.eq.s32.totalorder %s16, 0
    %p99 = por %p97, %p98
    %s101 = sadd.s32 %s100, 1
    %p104 = scmp.eq.s32.totalorder %s10, 1
    %p105 = scmp.ne.s32.totalorder %s100, %s102
    %p106 = scmp.eq.s32.totalorder %s10, 0
    %p107 = por %p105, %p106
    %p108 = scmp.ne.s32.totalorder %s100, %s102
    %p109 = scmp.eq.s32.totalorder %s15, 1
    %p110 = por %p108, %p109
    %p111 = scmp.ne.s32.totalorder %s102, %s103
    %p112 = scmp.eq.s32.totalorder %s15, 0
    %p113 = por %p111, %p112
    %p114 = scmp.ne.s32.totalorder %s102, %s103
    %p115 = scmp.eq.s32.totalorder %s16, 1
    %p116 = por %p114, %p115
    %p118 = scmp.ne.s32.totalorder %s103, %s117
    %p119 = scmp.eq.s32.totalorder %s16, 0
    %p120 = por %p118, %p119
    %s121 = ssub.s32 %s17, %s29
    %p122 = scmp.eq.s32.totalorder %s121, 0
    %s124 = sadd.s32 %s123, 1
    %s125 = scalar_select %p122, %s123, %s124
    %p128 = pneg %p122
    %p129 = scmp.eq.s32.totalorder %s10, 1
    %p130 = por %p128, %p129
    %p131 = scmp.ne.s32.totalorder %s123, %s126
    %p132 = scmp.eq.s32.totalorder %s10, 0
    %p133 = por %p131, %p132
    %p134 = scmp.ne.s32.totalorder %s123, %s126
    %p135 = scmp.eq.s32.totalorder %s15, 1
    %p136 = por %p134, %p135
    %p137 = scmp.ne.s32.totalorder %s126, %s127
    %p138 = scmp.eq.s32.totalorder %s15, 0
    %p139 = por %p137, %p138
    %p140 = scmp.ne.s32.totalorder %s126, %s127
    %p141 = scmp.eq.s32.totalorder %s16, 1
    %p142 = por %p140, %p141
    %p144 = scmp.ne.s32.totalorder %s127, %s143
    %p145 = scmp.eq.s32.totalorder %s16, 0
    %p146 = por %p144, %p145
    %p147 = scmp.le.s32.totalorder 1, %s10
    %p148 = scmp.lt.s32.totalorder %s10, 3
    %p149 = pnand %p147, %p148
    %p150 = pneg %p149
    // Predicated region
    $region9: #{tpu_custom_call.1} parent=5 // pred_check
      _
    $region10: #{tpu_custom_call.1} parent=5 // pred_check_branch
      %152 = sbr.rel (%p149) target = $region12
    $region11: #{tpu_custom_call.1} parent=5 // pred_region
      %s153 = ssub.s32 %s10, 1
      // Predicated region
      $region13: #{tpu_custom_call.1} parent=11 // pred_check
        %p154 = pneg %p71
      $region14: #{tpu_custom_call.1} parent=11 // pred_check_branch
        %156 = sbr.rel (%p154) target = $region16
      $region15: #{tpu_custom_call.1} parent=11 // pred_region
        _
      $region16: #{tpu_custom_call.1} parent=11 // pred_fallthru
        _
      // Predicated region
      $region17: #{tpu_custom_call.1} parent=11 // pred_check
        %p157 = pneg %p92
      $region18: #{tpu_custom_call.1} parent=11 // pred_check_branch
        %159 = sbr.rel (%p157) target = $region20
      $region19: #{tpu_custom_call.1} parent=11 // pred_region
        _
      $region20: #{tpu_custom_call.1} parent=11 // pred_fallthru
        _
      // Predicated region
      $region21: #{tpu_custom_call.1} parent=11 // pred_check
        %p160 = pneg %p113
      $region22: #{tpu_custom_call.1} parent=11 // pred_check_branch
        %162 = sbr.rel (%p160) target = $region24
      $region23: #{tpu_custom_call.1} parent=11 // pred_region
        _
      $region24: #{tpu_custom_call.1} parent=11 // pred_fallthru
        _
    $region12: #{tpu_custom_call.1} parent=5 // pred_fallthru
      _
    %p163 = scmp.lt.s32.totalorder %s10, 2
    // Predicated region
    $region25: #{tpu_custom_call.1} parent=5 // pred_check
      %p164 = pneg %p163
    $region26: #{tpu_custom_call.1} parent=5 // pred_check_branch
      %166 = sbr.rel (%p164) target = $region28
    $region27: #{tpu_custom_call.1} parent=5 // pred_region
      // Predicated region
      $region29: #{tpu_custom_call.1} parent=27 // pred_check
        %p167 = pneg %p44
      $region30: #{tpu_custom_call.1} parent=27 // pred_check_branch
        %169 = sbr.rel (%p167) target = $region32
      $region31: #{tpu_custom_call.1} parent=27 // pred_region
        %p170 = scmp.lt.s32.totalorder %s17, 1
        %s171 = scalar_select %p170, %s17, 1
        %p172 = scmp.lt.s32.totalorder %s18, 0
        %s173 = scalar_select %p172, %s18, 0
        %s174 = smul.addr %s171, 8
        %s175 = sadd.s32 %s173, %s174
        %s176 = smul.addr %s175, 8
        %s177 = scalar_lea.vmem %s0, %s176
      $region32: #{tpu_custom_call.1} parent=27 // pred_fallthru
        _
    $region28: #{tpu_custom_call.1} parent=5 // pred_fallthru
      _
    %p178 = scmp.le.s32.totalorder 1, %s10
    %p179 = scmp.lt.s32.totalorder %s10, 3
    %p180 = pnand %p178, %p179
    %p181 = pneg %p180
    // Predicated region
    $region33: #{tpu_custom_call.1} parent=5 // pred_check
      _
    $region34: #{tpu_custom_call.1} parent=5 // pred_check_branch
      %183 = sbr.rel (%p180) target = $region36
    $region35: #{tpu_custom_call.1} parent=5 // pred_region
      %s184 = ssub.s32 %s10, 1
      %p185 = scmp.lt.s32.totalorder %s19, 1
      %s186 = scalar_select %p185, %s19, 1
      %p187 = scmp.lt.s32.totalorder %s20, 0
      %s188 = scalar_select %p187, %s20, 0
      %s189 = smul.addr %s186, 8
      %s190 = sadd.s32 %s188, %s189
      %s191 = smul.addr %s190, 8
      %s192 = scalar_lea.vmem %s0, %s191
      %p193 = pneg %p50
      %p194 = pneg %p47
      %p195 = pneg %p71
      %p196 = pneg %p68
      %p197 = pneg %p92
      %p198 = pneg %p89
      %p199 = pneg %p113
      %p200 = pneg %p110
      %p201 = pneg %p139
      %p202 = pneg %p136
      %p203 = scmp.lt.s32.totalorder %s19, 1
      %s204 = scalar_select %p203, %s19, 1
      %s205 = smul.addr %s204, 8
      %s206 = smul.addr %s205, 8
      %s207 = scalar_lea.vmem %s4, %s206
      %p208 = scmp.lt.s32.totalorder %s19, 1
      %s209 = scalar_select %p208, %s19, 1
      %p210 = scmp.lt.s32.totalorder %s20, 0
      %s211 = scalar_select %p210, %s20, 0
      %s212 = smul.addr %s209, 8
      %s213 = sadd.s32 %s211, %s212
      %s214 = smul.addr %s213, 8
      %s215 = scalar_lea.vmem %s0, %s214
      %p216 = scmp.lt.s32.totalorder %s19, 1
      %s217 = scalar_select %p216, %s19, 1
      %s218 = smul.addr %s217, 8
      %s219 = smul.addr %s218, 8
      %s220 = scalar_lea.vmem %s4, %s219
      %p221 = scmp.eq.s32.totalorder %s20, 0
      // Predicated region
      $region37: #{tpu_custom_call.1} parent=35 // pred_check
        %p222 = pneg %p221
      $region38: #{tpu_custom_call.1} parent=35 // pred_check_branch
        %224 = sbr.rel (%p222) target = $region40
      $region39: #{tpu_custom_call.1} parent=35 // pred_region
        %vm225 = vcmask 0
        %226 = vst.msk [vmem:[#allocation3] sm:$0x1] %vm225, -inf
        %227 = vst.msk [vmem:[#allocation4] sm:$0x1] %vm225, 0.0
        %vm228 = vcmask 7168
        %229 = vst.msk [vmem:[#allocation5] sm:$0xff] %vm228, 0.0
        %230 = vst.msk [vmem:[#allocation5 + $0x8] sm:$0xff] %vm228, 0.0
        %231 = vst.msk [vmem:[#allocation5 + $0x10] sm:$0xff] %vm228, 0.0
        %232 = vst.msk [vmem:[#allocation5 + $0x18] sm:$0xff] %vm228, 0.0
        %233 = vst.msk [vmem:[#allocation5 + $0x20] sm:$0xff] %vm228, 0.0
        %234 = vst.msk [vmem:[#allocation5 + $0x28] sm:$0xff] %vm228, 0.0
        %235 = vst.msk [vmem:[#allocation5 + $0x30] sm:$0xff] %vm228, 0.0
        %236 = vst.msk [vmem:[#allocation5 + $0x38] sm:$0xff] %vm228, 0.0
      $region40: #{tpu_custom_call.1} parent=35 // pred_fallthru
        _
      %v237 = vld [vmem:[%s1] sm:$0xff]
      %v238 = vld [vmem:[%s1 + $0x8] sm:$0xff]
      %v239 = vld [vmem:[%s1 + $0x10] sm:$0xff]
      %v240 = vld [vmem:[%s1 + $0x18] sm:$0xff]
      %v241 = vld [vmem:[%s1 + $0x20] sm:$0xff]
      %v242 = vld [vmem:[%s1 + $0x28] sm:$0xff]
      %v243 = vld [vmem:[%s1 + $0x30] sm:$0xff]
      %v244 = vld [vmem:[%s1 + $0x38] sm:$0xff]
      %v245 = vld [vmem:[%s1 + $0x40] sm:$0xff]
      %v246 = vld [vmem:[%s1 + $0x48] sm:$0xff]
      %v247 = vld [vmem:[%s1 + $0x50] sm:$0xff]
      %v248 = vld [vmem:[%s1 + $0x58] sm:$0xff]
      %v249 = vld [vmem:[%s1 + $0x60] sm:$0xff]
      %v250 = vld [vmem:[%s1 + $0x68] sm:$0xff]
      %v251 = vld [vmem:[%s1 + $0x70] sm:$0xff]
      %v252 = vld [vmem:[%s1 + $0x78] sm:$0xff]
      %v253 = vld [vmem:[%s2] sm:$0xff]
      %v254 = vld [vmem:[%s2 + $0x8] sm:$0xff]
      %v255 = vld [vmem:[%s2 + $0x10] sm:$0xff]
      %v256 = vld [vmem:[%s2 + $0x18] sm:$0xff]
      %v257 = vld [vmem:[%s2 + $0x20] sm:$0xff]
      %v258 = vld [vmem:[%s2 + $0x28] sm:$0xff]
      %v259 = vld [vmem:[%s2 + $0x30] sm:$0xff]
      %v260 = vld [vmem:[%s2 + $0x38] sm:$0xff]
      %v261 = vld [vmem:[%s2 + $0x40] sm:$0xff]
      %v262 = vld [vmem:[%s2 + $0x48] sm:$0xff]
      %v263 = vld [vmem:[%s2 + $0x50] sm:$0xff]
      %v264 = vld [vmem:[%s2 + $0x58] sm:$0xff]
      %v265 = vld [vmem:[%s2 + $0x60] sm:$0xff]
      %v266 = vld [vmem:[%s2 + $0x68] sm:$0xff]
      %v267 = vld [vmem:[%s2 + $0x70] sm:$0xff]
      %v268 = vld [vmem:[%s2 + $0x78] sm:$0xff]
      %270 = vset.pattern.permute.xlu0 0
      %271 = vperm.xlu0 %270, %v253
      %v272 = vpop.permute.xlu0 %271
      %275 = vset.pattern.permute.xlu0 0
      %276 = vperm.xlu0 %275, %v254
      %v277 = vpop.permute.xlu0 %276
      %280 = vset.pattern.permute.xlu0 0
      %281 = vperm.xlu0 %280, %v255
      %v282 = vpop.permute.xlu0 %281
      %285 = vset.pattern.permute.xlu0 0
      %286 = vperm.xlu0 %285, %v256
      %v287 = vpop.permute.xlu0 %286
      %290 = vset.pattern.permute.xlu0 0
      %291 = vperm.xlu0 %290, %v257
      %v292 = vpop.permute.xlu0 %291
      %295 = vset.pattern.permute.xlu0 0
      %296 = vperm.xlu0 %295, %v258
      %v297 = vpop.permute.xlu0 %296
      %300 = vset.pattern.permute.xlu0 0
      %301 = vperm.xlu0 %300, %v259
      %v302 = vpop.permute.xlu0 %301
      %305 = vset.pattern.permute.xlu0 0
      %306 = vperm.xlu0 %305, %v260
      %v307 = vpop.permute.xlu0 %306
      %310 = vset.pattern.permute.xlu0 0
      %311 = vperm.xlu0 %310, %v261
      %v312 = vpop.permute.xlu0 %311
      %315 = vset.pattern.permute.xlu0 0
      %316 = vperm.xlu0 %315, %v262
      %v317 = vpop.permute.xlu0 %316
      %320 = vset.pattern.permute.xlu0 0
      %321 = vperm.xlu0 %320, %v263
      %v322 = vpop.permute.xlu0 %321
      %325 = vset.pattern.permute.xlu0 0
      %326 = vperm.xlu0 %325, %v264
      %v327 = vpop.permute.xlu0 %326
      %330 = vset.pattern.permute.xlu0 0
      %331 = vperm.xlu0 %330, %v265
      %v332 = vpop.permute.xlu0 %331
      %335 = vset.pattern.permute.xlu0 0
      %336 = vperm.xlu0 %335, %v266
      %v337 = vpop.permute.xlu0 %336
      %340 = vset.pattern.permute.xlu0 0
      %341 = vperm.xlu0 %340, %v267
      %v342 = vpop.permute.xlu0 %341
      %345 = vset.pattern.permute.xlu0 0
      %346 = vperm.xlu0 %345, %v268
      %v347 = vpop.permute.xlu0 %346
      %v349 = vld [vmem:[%s3] sm:$0xff]
      %v350 = vld [vmem:[%s3 + $0x8] sm:$0xff]
      %v351 = vld [vmem:[%s3 + $0x10] sm:$0xff]
      %v352 = vld [vmem:[%s3 + $0x18] sm:$0xff]
      %v353 = vld [vmem:[%s3 + $0x20] sm:$0xff]
      %v354 = vld [vmem:[%s3 + $0x28] sm:$0xff]
      %v355 = vld [vmem:[%s3 + $0x30] sm:$0xff]
      %v356 = vld [vmem:[%s3 + $0x38] sm:$0xff]
      %v357 = vld [vmem:[%s3 + $0x40] sm:$0xff]
      %v358 = vld [vmem:[%s3 + $0x48] sm:$0xff]
      %v359 = vld [vmem:[%s3 + $0x50] sm:$0xff]
      %v360 = vld [vmem:[%s3 + $0x58] sm:$0xff]
      %v361 = vld [vmem:[%s3 + $0x60] sm:$0xff]
      %v362 = vld [vmem:[%s3 + $0x68] sm:$0xff]
      %v363 = vld [vmem:[%s3 + $0x70] sm:$0xff]
      %v364 = vld [vmem:[%s3 + $0x78] sm:$0xff]
      %366 = vset.pattern.permute.xlu0 0
      %367 = vperm.xlu0 %366, %v349
      %v368 = vpop.permute.xlu0 %367
      %371 = vset.pattern.permute.xlu0 0
      %372 = vperm.xlu0 %371, %v350
      %v373 = vpop.permute.xlu0 %372
      %376 = vset.pattern.permute.xlu0 0
      %377 = vperm.xlu0 %376, %v351
      %v378 = vpop.permute.xlu0 %377
      %381 = vset.pattern.permute.xlu0 0
      %382 = vperm.xlu0 %381, %v352
      %v383 = vpop.permute.xlu0 %382
      %386 = vset.pattern.permute.xlu0 0
      %387 = vperm.xlu0 %386, %v353
      %v388 = vpop.permute.xlu0 %387
      %391 = vset.pattern.permute.xlu0 0
      %392 = vperm.xlu0 %391, %v354
      %v393 = vpop.permute.xlu0 %392
      %396 = vset.pattern.permute.xlu0 0
      %397 = vperm.xlu0 %396, %v355
      %v398 = vpop.permute.xlu0 %397
      %401 = vset.pattern.permute.xlu0 0
      %402 = vperm.xlu0 %401, %v356
      %v403 = vpop.permute.xlu0 %402
      %406 = vset.pattern.permute.xlu0 0
      %407 = vperm.xlu0 %406, %v357
      %v408 = vpop.permute.xlu0 %407
      %411 = vset.pattern.permute.xlu0 0
      %412 = vperm.xlu0 %411, %v358
      %v413 = vpop.permute.xlu0 %412
      %416 = vset.pattern.permute.xlu0 0
      %417 = vperm.xlu0 %416, %v359
      %v418 = vpop.permute.xlu0 %417
      %421 = vset.pattern.permute.xlu0 0
      %422 = vperm.xlu0 %421, %v360
      %v423 = vpop.permute.xlu0 %422
      %426 = vset.pattern.permute.xlu0 0
      %427 = vperm.xlu0 %426, %v361
      %v428 = vpop.permute.xlu0 %427
      %431 = vset.pattern.permute.xlu0 0
      %432 = vperm.xlu0 %431, %v362
      %v433 = vpop.permute.xlu0 %432
      %436 = vset.pattern.permute.xlu0 0
      %437 = vperm.xlu0 %436, %v363
      %v438 = vpop.permute.xlu0 %437
      %441 = vset.pattern.permute.xlu0 0
      %442 = vperm.xlu0 %441, %v364
      %v443 = vpop.permute.xlu0 %442
      %v445 = vld [vmem:[%s215] sm:$0xff]
      %v446 = vld [vmem:[%s215 + $0x8] sm:$0xff]
      %v447 = vld [vmem:[%s215 + $0x10] sm:$0xff]
      %v448 = vld [vmem:[%s215 + $0x18] sm:$0xff]
      %v449 = vld [vmem:[%s215 + $0x20] sm:$0xff]
      %v450 = vld [vmem:[%s215 + $0x28] sm:$0xff]
      %v451 = vld [vmem:[%s215 + $0x30] sm:$0xff]
      %v452 = vld [vmem:[%s215 + $0x38] sm:$0xff]
      %vm453 = vcmask 523264
      %v455 = vsel %vm453, %v237, 0
      %v458 = vsel %vm453, %v238, 0
      %v461 = vsel %vm453, %v239, 0
      %v464 = vsel %vm453, %v240, 0
      %v467 = vsel %vm453, %v241, 0
      %v470 = vsel %vm453, %v242, 0
      %v473 = vsel %vm453, %v243, 0
      %v476 = vsel %vm453, %v244, 0
      %v479 = vsel %vm453, %v245, 0
      %v482 = vsel %vm453, %v246, 0
      %v485 = vsel %vm453, %v247, 0
      %v488 = vsel %vm453, %v248, 0
      %v491 = vsel %vm453, %v249, 0
      %v494 = vsel %vm453, %v250, 0
      %v497 = vsel %vm453, %v251, 0
      %v500 = vsel %vm453, %v252, 0
      %502 = vmatprep.subr.mxu0 0.0
      %503 = vmatpush1.msra.mxu0 %v445
      %504 = vmatprep.subr.mxu0 0.0
      %505 = vmatpush1.msra.mxu0 %v446
      %506 = vmatprep.subr.mxu0 0.0
      %507 = vmatpush1.msra.mxu0 %v447
      %508 = vmatprep.subr.mxu0 0.0
      %509 = vmatpush1.msra.mxu0 %v448
      %510 = vmatprep.subr.mxu0 0.0
      %511 = vmatpush1.msra.mxu0 %v449
      %512 = vmatprep.subr.mxu0 0.0
      %513 = vmatpush1.msra.mxu0 %v450
      %514 = vmatprep.subr.mxu0 0.0
      %515 = vmatpush1.msra.mxu0 %v451
      %516 = vmatprep.subr.mxu0 0.0
      %517 = vmatpush1.msra.mxu0 %v452
      %518 = vmatprep.subr.mxu0 0.0
      %519 = vmatpush1.msra.mxu0 0.0
      %520 = vmatprep.subr.mxu0 0.0
      %521 = vmatpush1.msra.mxu0 0.0
      %522 = vmatprep.subr.mxu0 0.0
      %523 = vmatpush1.msra.mxu0 0.0
      %524 = vmatprep.subr.mxu0 0.0
      %525 = vmatpush1.msra.mxu0 0.0
      %526 = vmatprep.subr.mxu0 0.0
      %527 = vmatpush1.msra.mxu0 0.0
      %528 = vmatprep.subr.mxu0 0.0
      %529 = vmatpush1.msra.mxu0 0.0
      %530 = vmatprep.subr.mxu0 0.0
      %531 = vmatpush1.msra.mxu0 0.0
      %532 = vmatprep.subr.mxu0 0.0
      %533 = vmatpush1.msra.mxu0 0.0
      %534 = vmatprep.subr.mxu0 0.0
      %535 = vmatpush1.msra.mxu0 0.0
      %536 = vmatprep.subr.mxu0 0.0
      %537 = vmatpush1.msra.mxu0 0.0
      %538 = vmatprep.subr.mxu0 0.0
      %539 = vmatpush1.msra.mxu0 0.0
      %540 = vmatprep.subr.mxu0 0.0
      %541 = vmatpush1.msra.mxu0 0.0
      %542 = vmatprep.subr.mxu0 0.0
      %543 = vmatpush1.msra.mxu0 0.0
      %544 = vmatprep.subr.mxu0 0.0
      %545 = vmatpush1.msra.mxu0 0.0
      %546 = vmatprep.subr.mxu0 0.0
      %547 = vmatpush1.msra.mxu0 0.0
      %548 = vmatprep.subr.mxu0 0.0
      %549 = vmatpush1.msra.mxu0 0.0
      %550 = vmatprep.subr.mxu0 0.0
      %551 = vmatpush1.msra.mxu0 0.0
      %552 = vmatprep.subr.mxu0 0.0
      %553 = vmatpush1.msra.mxu0 0.0
      %554 = vmatprep.subr.mxu0 0.0
      %555 = vmatpush1.msra.mxu0 0.0
      %556 = vmatprep.subr.mxu0 0.0
      %557 = vmatpush1.msra.mxu0 0.0
      %558 = vmatprep.subr.mxu0 0.0
      %559 = vmatpush1.msra.mxu0 0.0
      %560 = vmatprep.subr.mxu0 0.0
      %561 = vmatpush1.msra.mxu0 0.0
      %562 = vmatprep.subr.mxu0 0.0
      %563 = vmatpush1.msra.mxu0 0.0
      %564 = vmatprep.subr.mxu0 0.0
      %565 = vmatpush1.msra.mxu0 0.0
      %566 = vmatprep.mubr.f32.mxu0 0.0
      %567 = vmatmul.mubr.f32.gmra.mrb[0].mxu0 %v455
      %v568 = vpop.f32.mrb[0].mxu0
      %v569 = vadd.f32 %v272, %v568
      %v570 = vpop.f32.mrb[0].mxu0
      %571 = vmatprep.mubr.f32.mxu0 0.0
      %572 = vmatmul.mubr.f32.gmra.mrb[0].mxu0 %v458
      %v573 = vpop.f32.mrb[0].mxu0
      %v574 = vadd.f32 %v277, %v573
      %v575 = vpop.f32.mrb[0].mxu0
      %576 = vmatprep.mubr.f32.mxu0 0.0
      %577 = vmatmul.mubr.f32.gmra.mrb[0].mxu0 %v461
      %v578 = vpop.f32.mrb[0].mxu0
      %v579 = vadd.f32 %v282, %v578
      %v580 = vpop.f32.mrb[0].mxu0
      %581 = vmatprep.mubr.f32.mxu0 0.0
      %582 = vmatmul.mubr.f32.gmra.mrb[0].mxu0 %v464
      %v583 = vpop.f32.mrb[0].mxu0
      %v584 = vadd.f32 %v287, %v583
      %v585 = vpop.f32.mrb[0].mxu0
      %586 = vmatprep.mubr.f32.mxu0 0.0
      %587 = vmatmul.mubr.f32.gmra.mrb[0].mxu0 %v467
      %v588 = vpop.f32.mrb[0].mxu0
      %v589 = vadd.f32 %v292, %v588
      %v590 = vpop.f32.mrb[0].mxu0
      %591 = vmatprep.mubr.f32.mxu0 0.0
      %592 = vmatmul.mubr.f32.gmra.mrb[0].mxu0 %v470
      %v593 = vpop.f32.mrb[0].mxu0
      %v594 = vadd.f32 %v297, %v593
      %v595 = vpop.f32.mrb[0].mxu0
      %596 = vmatprep.mubr.f32.mxu0 0.0
      %597 = vmatmul.mubr.f32.gmra.mrb[0].mxu0 %v473
      %v598 = vpop.f32.mrb[0].mxu0
      %v599 = vadd.f32 %v302, %v598
      %v600 = vpop.f32.mrb[0].mxu0
      %601 = vmatprep.mubr.f32.mxu0 0.0
      %602 = vmatmul.mubr.f32.gmra.mrb[0].mxu0 %v476
      %v603 = vpop.f32.mrb[0].mxu0
      %v604 = vadd.f32 %v307, %v603
      %v605 = vpop.f32.mrb[0].mxu0
      %606 = vmatprep.mubr.f32.mxu0 0.0
      %607 = vmatmul.mubr.f32.gmra.mrb[0].mxu0 %v479
      %v608 = vpop.f32.mrb[0].mxu0
      %v609 = vadd.f32 %v312, %v608
      %v610 = vpop.f32.mrb[0].mxu0
      %611 = vmatprep.mubr.f32.mxu0 0.0
      %612 = vmatmul.mubr.f32.gmra.mrb[0].mxu0 %v482
      %v613 = vpop.f32.mrb[0].mxu0
      %v614 = vadd.f32 %v317, %v613
      %v615 = vpop.f32.mrb[0].mxu0
      %616 = vmatprep.mubr.f32.mxu0 0.0
      %617 = vmatmul.mubr.f32.gmra.mrb[0].mxu0 %v485
      %v618 = vpop.f32.mrb[0].mxu0
      %v619 = vadd.f32 %v322, %v618
      %v620 = vpop.f32.mrb[0].mxu0
      %621 = vmatprep.mubr.f32.mxu0 0.0
      %622 = vmatmul.mubr.f32.gmra.mrb[0].mxu0 %v488
      %v623 = vpop.f32.mrb[0].mxu0
      %v624 = vadd.f32 %v327, %v623
      %v625 = vpop.f32.mrb[0].mxu0
      %626 = vmatprep.mubr.f32.mxu0 0.0
      %627 = vmatmul.mubr.f32.gmra.mrb[0].mxu0 %v491
      %v628 = vpop.f32.mrb[0].mxu0
      %v629 = vadd.f32 %v332, %v628
      %v630 = vpop.f32.mrb[0].mxu0
      %631 = vmatprep.mubr.f32.mxu0 0.0
      %632 = vmatmul.mubr.f32.gmra.mrb[0].mxu0 %v494
      %v633 = vpop.f32.mrb[0].mxu0
      %v634 = vadd.f32 %v337, %v633
      %v635 = vpop.f32.mrb[0].mxu0
      %636 = vmatprep.mubr.f32.mxu0 0.0
      %637 = vmatmul.mubr.f32.gmra.mrb[0].mxu0 %v497
      %v638 = vpop.f32.mrb[0].mxu0
      %v639 = vadd.f32 %v342, %v638
      %v640 = vpop.f32.mrb[0].mxu0
      %641 = vmatprep.mubr.f32.mxu0 0.0
      %642 = vmatmul.mubr.f32.gmra.mrb[0].mxu0 %v500
      %v643 = vpop.f32.mrb[0].mxu0
      %v644 = vadd.f32 %v347, %v643
      %v645 = vpop.f32.mrb[0].mxu0
      %646 = vdwg.mxu0
      %v647 = vmax.f32 %v569, 0.0
      %v648 = vmax.f32 %v574, 0.0
      %v649 = vmax.f32 %v579, 0.0
      %v650 = vmax.f32 %v584, 0.0
      %v651 = vmax.f32 %v589, 0.0
      %v652 = vmax.f32 %v594, 0.0
      %v653 = vmax.f32 %v599, 0.0
      %v654 = vmax.f32 %v604, 0.0
      %v655 = vmax.f32 %v609, 0.0
      %v656 = vmax.f32 %v614, 0.0
      %v657 = vmax.f32 %v619, 0.0
      %v658 = vmax.f32 %v624, 0.0
      %v659 = vmax.f32 %v629, 0.0
      %v660 = vmax.f32 %v634, 0.0
      %v661 = vmax.f32 %v639, 0.0
      %v662 = vmax.f32 %v644, 0.0
      %v663 = vmul.f32 %v647, %v368
      %v664 = vmul.f32 %v648, %v373
      %v665 = vmul.f32 %v649, %v378
      %v666 = vmul.f32 %v650, %v383
      %v667 = vmul.f32 %v651, %v388
      %v668 = vmul.f32 %v652, %v393
      %v669 = vmul.f32 %v653, %v398
      %v670 = vmul.f32 %v654, %v403
      %v671 = vmul.f32 %v655, %v408
      %v672 = vmul.f32 %v656, %v413
      %v673 = vmul.f32 %v657, %v418
      %v674 = vmul.f32 %v658, %v423
      %v675 = vmul.f32 %v659, %v428
      %v676 = vmul.f32 %v660, %v433
      %v677 = vmul.f32 %v661, %v438
      %v678 = vmul.f32 %v662, %v443
      %vm679 = vcmask 130048
      %v680 = vsel %vm679, %v663, 0.0
      %v681 = vsel %vm679, %v664, 0.0
      %v682 = vadd.f32 %v680, %v681
      %v683 = vsel %vm679, %v665, 0.0
      %v684 = vadd.f32 %v682, %v683
      %v685 = vsel %vm679, %v666, 0.0
      %v686 = vadd.f32 %v684, %v685
      %v687 = vsel %vm679, %v667, 0.0
      %v688 = vadd.f32 %v686, %v687
      %v689 = vsel %vm679, %v668, 0.0
      %v690 = vadd.f32 %v688, %v689
      %v691 = vsel %vm679, %v669, 0.0
      %v692 = vadd.f32 %v690, %v691
      %v693 = vsel %vm679, %v670, 0.0
      %v694 = vadd.f32 %v692, %v693
      %v695 = vsel %vm679, %v671, 0.0
      %v696 = vadd.f32 %v694, %v695
      %v697 = vsel %vm679, %v672, 0.0
      %v698 = vadd.f32 %v696, %v697
      %v699 = vsel %vm679, %v673, 0.0
      %v700 = vadd.f32 %v698, %v699
      %v701 = vsel %vm679, %v674, 0.0
      %v702 = vadd.f32 %v700, %v701
      %v703 = vsel %vm679, %v675, 0.0
      %v704 = vadd.f32 %v702, %v703
      %v705 = vsel %vm679, %v676, 0.0
      %v706 = vadd.f32 %v704, %v705
      %v707 = vsel %vm679, %v677, 0.0
      %v708 = vadd.f32 %v706, %v707
      %v709 = vsel %vm679, %v678, 0.0
      %v710 = vadd.f32 %v708, %v709
      %v711 = vrot.slane %v710, 4
      %v712 = vadd.f32 %v710, %v711
      %v713 = vrot.slane %v712, 2
      %v714 = vadd.f32 %v712, %v713
      %v715 = vrot.slane %v714, 1
      %v716 = vadd.f32 %v714, %v715
      %vm717 = vcmask 122880
      %718 = vst.msk [vmem:[#allocation2] sm:$0x1] %vm717, %v716
      %v719 = vld [vmem:[%s215] sm:$0xff]
      %v720 = vld [vmem:[%s215 + $0x8] sm:$0xff]
      %v721 = vld [vmem:[%s215 + $0x10] sm:$0xff]
      %v722 = vld [vmem:[%s215 + $0x18] sm:$0xff]
      %v723 = vld [vmem:[%s215 + $0x20] sm:$0xff]
      %v724 = vld [vmem:[%s215 + $0x28] sm:$0xff]
      %v725 = vld [vmem:[%s215 + $0x30] sm:$0xff]
      %v726 = vld [vmem:[%s215 + $0x38] sm:$0xff]
      %v727 = vld [vmem:[#allocation2] sm:$0x1]
      %v728 = vld [vmem:[#allocation3] sm:$0x1]
      %v729 = vsel %vm717, %v727, -inf
      %730 = vmax.xlane.f32.xlu0 %v729
      %v731 = vpop.xlane.xlu0 %730
      %v732 = vmax.f32 %v728, %v731
      %v733 = vsub.f32 %v728, %v732
      %v734 = vmul.f32 %v733, 1.442695
      %v735 = vpow.pop %v734
      %737 = vset.pattern.permute.xlu0 0
      %738 = vperm.xlu0 %737, %v732
      %v739 = vpop.permute.xlu0 %738
      %v741 = vlaneseq
      %v742 = vshrl.u32 %v741, 7
      %v743 = vsub.s32 0, %v742
      %v744 = vrot.slane %v739, %v743
      %v745 = vsub.f32 %v727, %v744
      %v746 = vmul.f32 %v745, 1.442695
      %v747 = vpow.pop %v746
      %v748 = vld [vmem:[#allocation4] sm:$0x1]
      %v749 = vmul.f32 %v735, %v748
      %v750 = vsel %vm717, %v747, 0.0
      %751 = vadd.xlane.f32.xlu0 %v750
      %v752 = vpop.xlane.xlu0 %751
      %v753 = vadd.f32 %v749, %v752
      %vm754 = vcmask 0
      %755 = vst.msk [vmem:[#allocation4] sm:$0x1] %vm754, %v753
      %v756 = vld [vmem:[#allocation5] sm:$0xff]
      %v757 = vld [vmem:[#allocation5 + $0x8] sm:$0xff]
      %v758 = vld [vmem:[#allocation5 + $0x10] sm:$0xff]
      %v759 = vld [vmem:[#allocation5 + $0x18] sm:$0xff]
      %v760 = vld [vmem:[#allocation5 + $0x20] sm:$0xff]
      %v761 = vld [vmem:[#allocation5 + $0x28] sm:$0xff]
      %v762 = vld [vmem:[#allocation5 + $0x30] sm:$0xff]
      %v763 = vld [vmem:[#allocation5 + $0x38] sm:$0xff]
      %v765 = vlaneseq
      %v766 = vshrl.u32 %v765, 7
      %v767 = vsub.s32 0, %v766
      %v768 = vrot.slane %v735, %v767
      %v770 = vmul.f32 %v768, %v756
      %v771 = vmul.f32 %v768, %v757
      %v772 = vmul.f32 %v768, %v758
      %v773 = vmul.f32 %v768, %v759
      %v774 = vmul.f32 %v768, %v760
      %v775 = vmul.f32 %v768, %v761
      %v776 = vmul.f32 %v768, %v762
      %v777 = vmul.f32 %v768, %v763
      %v779 = vlaneseq
      %v780 = vshrl.u32 %v779, 7
      %v781 = vsub.s32 0, %v780
      %v782 = vrot.slane %v747, %v781
      %v784 = vmul.f32 %v719, %v782
      %v785 = vmul.f32 %v720, %v782
      %v786 = vmul.f32 %v721, %v782
      %v787 = vmul.f32 %v722, %v782
      %v788 = vmul.f32 %v723, %v782
      %v789 = vmul.f32 %v724, %v782
      %v790 = vmul.f32 %v725, %v782
      %v791 = vmul.f32 %v726, %v782
      %v792 = vsel %vm679, %v784, 0.0
      %793 = vadd.xlane.f32.xlu0 %v792
      %v794 = vpop.xlane.xlu0 %793
      %v795 = vsel %vm679, %v785, 0.0
      %796 = vadd.xlane.f32.xlu0 %v795
      %v797 = vpop.xlane.xlu0 %796
      %v798 = vsel %vm679, %v786, 0.0
      %799 = vadd.xlane.f32.xlu0 %v798
      %v800 = vpop.xlane.xlu0 %799
      %v801 = vsel %vm679, %v787, 0.0
      %802 = vadd.xlane.f32.xlu0 %v801
      %v803 = vpop.xlane.xlu0 %802
      %v804 = vsel %vm679, %v788, 0.0
      %805 = vadd.xlane.f32.xlu0 %v804
      %v806 = vpop.xlane.xlu0 %805
      %v807 = vsel %vm679, %v789, 0.0
      %808 = vadd.xlane.f32.xlu0 %v807
      %v809 = vpop.xlane.xlu0 %808
      %v810 = vsel %vm679, %v790, 0.0
      %811 = vadd.xlane.f32.xlu0 %v810
      %v812 = vpop.xlane.xlu0 %811
      %v813 = vsel %vm679, %v791, 0.0
      %814 = vadd.xlane.f32.xlu0 %v813
      %v815 = vpop.xlane.xlu0 %814
      %v816 = vadd.f32 %v770, %v794
      %v817 = vadd.f32 %v771, %v797
      %v818 = vadd.f32 %v772, %v800
      %v819 = vadd.f32 %v773, %v803
      %v820 = vadd.f32 %v774, %v806
      %v821 = vadd.f32 %v775, %v809
      %v822 = vadd.f32 %v776, %v812
      %v823 = vadd.f32 %v777, %v815
      %vm824 = vcmask 7168
      %825 = vst.msk [vmem:[#allocation5] sm:$0xff] %vm824, %v816
      %826 = vst.msk [vmem:[#allocation5 + $0x8] sm:$0xff] %vm824, %v817
      %827 = vst.msk [vmem:[#allocation5 + $0x10] sm:$0xff] %vm824, %v818
      %828 = vst.msk [vmem:[#allocation5 + $0x18] sm:$0xff] %vm824, %v819
      %829 = vst.msk [vmem:[#allocation5 + $0x20] sm:$0xff] %vm824, %v820
      %830 = vst.msk [vmem:[#allocation5 + $0x28] sm:$0xff] %vm824, %v821
      %831 = vst.msk [vmem:[#allocation5 + $0x30] sm:$0xff] %vm824, %v822
      %832 = vst.msk [vmem:[#allocation5 + $0x38] sm:$0xff] %vm824, %v823
      %833 = vst.msk [vmem:[#allocation3] sm:$0x1] %vm754, %v732
      // Predicated region
      $region41: #{tpu_custom_call.1} parent=35 // pred_check
        %p834 = pneg %p221
      $region42: #{tpu_custom_call.1} parent=35 // pred_check_branch
        %836 = sbr.rel (%p834) target = $region44
      $region43: #{tpu_custom_call.1} parent=35 // pred_region
        %v837 = vld [vmem:[#allocation4] sm:$0x1]
        %v838 = vrcp.pop %v837
        %v839 = vmul.f32 %v837, %v838
        %v840 = vsub.f32 2.0, %v839
        %v841 = vmul.f32 %v838, %v840
        %v842 = vmul.f32 %v837, %v841
        %v843 = vsub.f32 2.0, %v842
        %v844 = vmul.f32 %v841, %v843
        %v845 = vld [vmem:[#allocation5] sm:$0xff]
        %v846 = vld [vmem:[#allocation5 + $0x8] sm:$0xff]
        %v847 = vld [vmem:[#allocation5 + $0x10] sm:$0xff]
        %v848 = vld [vmem:[#allocation5 + $0x18] sm:$0xff]
        %v849 = vld [vmem:[#allocation5 + $0x20] sm:$0xff]
        %v850 = vld [vmem:[#allocation5 + $0x28] sm:$0xff]
        %v851 = vld [vmem:[#allocation5 + $0x30] sm:$0xff]
        %v852 = vld [vmem:[#allocation5 + $0x38] sm:$0xff]
        %v854 = vlaneseq
        %v855 = vshrl.u32 %v854, 7
        %v856 = vsub.s32 0, %v855
        %v857 = vrot.slane %v844, %v856
        %v859 = vmul.f32 %v845, %v857
        %v860 = vmul.f32 %v846, %v857
        %v861 = vmul.f32 %v847, %v857
        %v862 = vmul.f32 %v848, %v857
        %v863 = vmul.f32 %v849, %v857
        %v864 = vmul.f32 %v850, %v857
        %v865 = vmul.f32 %v851, %v857
        %v866 = vmul.f32 %v852, %v857
        %867 = vst.msk [vmem:[%s220] sm:$0xff] %vm824, %v859
        %868 = vst.msk [vmem:[%s220 + $0x8] sm:$0xff] %vm824, %v860
        %869 = vst.msk [vmem:[%s220 + $0x10] sm:$0xff] %vm824, %v861
        %870 = vst.msk [vmem:[%s220 + $0x18] sm:$0xff] %vm824, %v862
        %871 = vst.msk [vmem:[%s220 + $0x20] sm:$0xff] %vm824, %v863
        %872 = vst.msk [vmem:[%s220 + $0x28] sm:$0xff] %vm824, %v864
        %873 = vst.msk [vmem:[%s220 + $0x30] sm:$0xff] %vm824, %v865
        %874 = vst.msk [vmem:[%s220 + $0x38] sm:$0xff] %vm824, %v866
      $region44: #{tpu_custom_call.1} parent=35 // pred_fallthru
        _
      %p875 = scmp.lt.s32.totalorder %s19, 1
      %s876 = scalar_select %p875, %s19, 1
      %s877 = smul.addr %s876, 8
      %s878 = smul.addr %s877, 8
      %s879 = scalar_lea.vmem %s4, %s878
      // Predicated region
      $region45: #{tpu_custom_call.1} parent=35 // pred_check
        %p880 = pneg %p136
      $region46: #{tpu_custom_call.1} parent=35 // pred_check_branch
        %882 = sbr.rel (%p880) target = $region48
      $region47: #{tpu_custom_call.1} parent=35 // pred_region
        _
      $region48: #{tpu_custom_call.1} parent=35 // pred_fallthru
        _
    $region36: #{tpu_custom_call.1} parent=5 // pred_fallthru
      _
    %p883 = scmp.le.s32.totalorder 2, %s10
    // Predicated region
    $region49: #{tpu_custom_call.1} parent=5 // pred_check
      %p884 = pneg %p883
    $region50: #{tpu_custom_call.1} parent=5 // pred_check_branch
      %886 = sbr.rel (%p884) target = $region52
    $region51: #{tpu_custom_call.1} parent=5 // pred_region
      %s887 = ssub.s32 %s10, 2
      // Predicated region
      $region53: #{tpu_custom_call.1} parent=51 // pred_check
        %p888 = pneg %p142
      $region54: #{tpu_custom_call.1} parent=51 // pred_check_branch
        %890 = sbr.rel (%p888) target = $region56
      $region55: #{tpu_custom_call.1} parent=51 // pred_region
        %p891 = scmp.lt.s32.totalorder %s21, 1
        %s892 = scalar_select %p891, %s21, 1
        %s893 = smul.addr %s892, 8
        %s894 = smul.addr %s893, 8
        %s895 = scalar_lea.vmem %s4, %s894
      $region56: #{tpu_custom_call.1} parent=51 // pred_fallthru
        _
    $region52: #{tpu_custom_call.1} parent=5 // pred_fallthru
      _
  $region6: #{tpu_custom_call.1} parent=0 // loop_footer
    %s14 = sadd.s32 1, %s10
  $region7: #{tpu_custom_call.1} parent=0 // loop_footer_branch
    %9 = sbr.rel target = $region3
  $region8: #{tpu_custom_call.1} parent=0 // loop_exit
    _

</llo_original>
